<compile_context>
chip_gen: v6e
topology: v6e:2x2x1
jax: 0.10.0
libtpu: 0.0.40
codegen_flags: <defaults>
</compile_context>

<pallas_src>
import numpy as np
import jax
import jax.numpy as jnp
from jax.experimental import pallas as pl
from jax.experimental.pallas import tpu as pltpu


# ----------------------------- Pallas kernel -------------------------------

def bias_free_ln_kernel(x_ref, w_ref, o_ref):
    # x_ref: (TN, C) tile of rows; normalization is over the last (C) axis.
    x = x_ref[...].astype(jnp.float32)
    w = w_ref[...].astype(jnp.float32)                    # (1, C)
    mu = jnp.mean(x, axis=-1, keepdims=True)
    msq = jnp.mean(x * x, axis=-1, keepdims=True)
    # One-pass population variance; clamp guards against tiny negative values
    # from cancellation (numerically safe for the rsqrt below).
    var = jnp.maximum(msq - mu * mu, 0.0)
    inv = jax.lax.rsqrt(var + 1e-5)                       # EUP, frees VALU slots
    # BiasFree: scale the *raw* x (mean is only used for the variance).
    o_ref[...] = (x * inv * w).astype(o_ref.dtype)


# ----------------------------- wrapper --------------------------------------

def _round_up(x, m):
    return ((x + m - 1) // m) * m


def _round_down(x, m):
    return (x // m) * m


def bias_free_layernorm(x, weight, *, target_tile_bytes=2 << 20):
    """BiasFree LayerNorm over the last axis of x. weight: shape (C,)."""
    orig_shape = x.shape
    C = orig_shape[-1]
    x2 = x.reshape(-1, C)
    N = x2.shape[0]
    itemsize = x2.dtype.itemsize

    # ---- adaptive row-tile size -------------------------------------------
    # Target ~target_tile_bytes per input buffer (2 in + 2 out double-buffered
    # => ~4x that resident in VMEM), rows a multiple of 8 (sublane), and at
    # least two grid steps when there is enough work so both v7x TensorCores
    # get balanced tiles. No padding / slicing: pl.cdiv + partial edge blocks.
    if N <= 8:
        tn = N                                  # full dim, always legal
    else:
        rows_cap = max(8, _round_down(target_tile_bytes // max(1, C * itemsize), 8))
        half = _round_up(pl.cdiv(N, 2), 8)      # guarantees grid_n >= 2
        tn = min(rows_cap, half)
    grid_n = pl.cdiv(N, tn)

    cost = pl.CostEstimate(
        flops=6 * N * C,
        transcendentals=N,
        bytes_accessed=2 * N * C * itemsize + C * itemsize,
    )

    out = pl.pallas_call(
        bias_free_ln_kernel,
        out_shape=jax.ShapeDtypeStruct((N, C), x.dtype),
        grid=(grid_n,),
        in_specs=[
            pl.BlockSpec((tn, C), lambda i: (i, 0)),
            pl.BlockSpec((1, C), lambda i: (0, 0)),
        ],
        out_specs=pl.BlockSpec((tn, C), lambda i: (i, 0)),
        compiler_params=pltpu.CompilerParams(
            dimension_semantics=("parallel",),
            vmem_limit_bytes=32 << 20,
        ),
        cost_estimate=cost,
    )(x2, weight.reshape(1, C))

    return out.reshape(orig_shape)


# ----------------------------- pure-JAX reference ----------------------------

def reference_bias_free_layernorm(x, weight):
    # torch: sigma = x.var(-1, keepdim=True, unbiased=False)
    #        return x / sqrt(sigma + 1e-5) * weight
    sigma = jnp.var(x.astype(jnp.float32), axis=-1, keepdims=True)  # ddof=0
    y = x.astype(jnp.float32) / jnp.sqrt(sigma + 1e-5) * weight.astype(jnp.float32)
    return y.astype(x.dtype)


# ------------------------------------ main -----------------------------------

if __name__ == "__main__":
    # Shapes consistent with the module's use in SSCHSR: tokens (B, H*W, C),
    # LayerNorm over the channel dim C.
    B, H, W, C = 2, 16, 16, 48
    L = H * W

    key = jax.random.PRNGKey(0)
    kx, kw = jax.random.split(key)
    x = jax.random.normal(kx, (B, L, C), jnp.float32)
    # Module initializes weight to ones; perturb it so the test is non-trivial.
    weight = 1.0 + 0.1 * jax.random.normal(kw, (C,), jnp.float32)

    out = jax.block_until_ready(bias_free_layernorm(x, weight))
    ref = jax.block_until_ready(reference_bias_free_layernorm(x, weight))

    np.testing.assert_allclose(np.asarray(out), np.asarray(ref),
                               rtol=1e-5, atol=1e-5)
    print("KERNEL_OK")
</pallas_src>

<mosaic_0001>
module attributes {stable_mosaic.version = 11 : i64} {
  func.func @bias_free_ln_kernel(%arg0: i32, %arg1: memref<256x48xf32, #tpu.memory_space<vmem>>, %arg2: memref<1x48xf32, #tpu.memory_space<vmem>>, %arg3: memref<256x48xf32, #tpu.memory_space<vmem>>) attributes {dimension_semantics = [#tpu.dimension_semantics<parallel>], iteration_bounds = array<i64: 2>, scalar_prefetch = 0 : i64, scratch_operands = 0 : i64, tpu.core_type = #tpu.core_type<tc>, window_params = [{transform_indices = @transform_0, window_bounds = array<i64: 256, 48>}, {pipeline_mode = #tpu.pipeline_mode<synchronous>, transform_indices = @transform_1, window_bounds = array<i64: 1, 48>}, {transform_indices = @transform_2, window_bounds = array<i64: 256, 48>}]} {
    %c0 = arith.constant 0 : index
    %c0_0 = arith.constant 0 : index
    %0 = vector.load %arg1[%c0, %c0_0] : memref<256x48xf32, #tpu.memory_space<vmem>>, vector<256x48xf32>
    %c0_1 = arith.constant 0 : index
    %c0_2 = arith.constant 0 : index
    %1 = vector.load %arg2[%c0_1, %c0_2] : memref<1x48xf32, #tpu.memory_space<vmem>>, vector<1x48xf32>
    %cst = arith.constant dense<0.000000e+00> : vector<256xf32>
    %2 = vector.multi_reduction <add>, %0, %cst [1] : vector<256x48xf32> to vector<256xf32>
    %3 = vector.shape_cast %2 : vector<256xf32> to vector<256x1xf32>
    %cst_3 = arith.constant 4.800000e+01 : f32
    %4 = vector.broadcast %cst_3 : f32 to vector<256x1xf32>
    %5 = arith.divf %3, %4 : vector<256x1xf32>
    %6 = arith.mulf %0, %0 : vector<256x48xf32>
    %cst_4 = arith.constant dense<0.000000e+00> : vector<256xf32>
    %7 = vector.multi_reduction <add>, %6, %cst_4 [1] : vector<256x48xf32> to vector<256xf32>
    %8 = vector.shape_cast %7 : vector<256xf32> to vector<256x1xf32>
    %cst_5 = arith.constant 4.800000e+01 : f32
    %9 = vector.broadcast %cst_5 : f32 to vector<256x1xf32>
    %10 = arith.divf %8, %9 : vector<256x1xf32>
    %11 = arith.mulf %5, %5 : vector<256x1xf32>
    %12 = arith.subf %10, %11 : vector<256x1xf32>
    %cst_6 = arith.constant 0.000000e+00 : f32
    %13 = vector.broadcast %cst_6 : f32 to vector<256x1xf32>
    %14 = arith.maximumf %12, %13 : vector<256x1xf32>
    %cst_7 = arith.constant 9.99999974E-6 : f32
    %15 = vector.broadcast %cst_7 : f32 to vector<256x1xf32>
    %16 = arith.addf %14, %15 : vector<256x1xf32>
    %17 = math.rsqrt %16 : vector<256x1xf32>
    %18 = vector.broadcast %17 : vector<256x1xf32> to vector<256x48xf32>
    %19 = arith.mulf %0, %18 : vector<256x48xf32>
    %20 = vector.broadcast %1 : vector<1x48xf32> to vector<256x48xf32>
    %21 = arith.mulf %19, %20 : vector<256x48xf32>
    %c0_8 = arith.constant 0 : index
    %c0_9 = arith.constant 0 : index
    %22 = vector.load %arg3[%c0_8, %c0_9] : memref<256x48xf32, #tpu.memory_space<vmem>>, vector<256x48xf32>
    tpu.vector_store %arg3[%c0_8, %c0_9], %21 {strides = array<i32>} : memref<256x48xf32, #tpu.memory_space<vmem>>, vector<256x48xf32>,
    return
  }
  func.func @transform_0(%arg0: i32) -> (i32, i32) {
    %c0_i32 = arith.constant 0 : i32
    %c0_i32_0 = arith.constant 0 : i32
    return %arg0, %c0_i32 : i32, i32
  }
  func.func @transform_1(%arg0: i32) -> (i32, i32) {
    %c0_i32 = arith.constant 0 : i32
    %c0_i32_0 = arith.constant 0 : i32
    %c0_i32_1 = arith.constant 0 : i32
    return %c0_i32, %c0_i32_0 : i32, i32
  }
  func.func @transform_2(%arg0: i32) -> (i32, i32) {
    %c0_i32 = arith.constant 0 : i32
    %c0_i32_0 = arith.constant 0 : i32
    return %arg0, %c0_i32 : i32, i32
  }
}

</mosaic_0001>

<llo_original>
// kernel: tpu_custom_call.1
$region0: #{tpu_custom_call.1}
  #allocation0 [shape = 'u32[]', space=smem, size = 0x4, offset = 0x4, fixed_abs, tag = 'smem constant byte address 0x4 - core index']
  #allocation1 [shape = 'u32[144,128]{1,0:T(1,128)}', space=vmem, size = 0x12000, scoped, tag = 'internal scratch']
  %s0 = inlined_call_operand.vmem [shape: f32[512,48], index: 0, kind: input, shape index: {}]
  %s1 = inlined_call_operand.vmem [shape: f32[1,48], index: 1, kind: input, shape index: {}]
  %s2 = inlined_call_operand.vmem [shape: f32[512,48], index: 2, kind: output, shape index: {}]
  %s3 = sld [smem:[#allocation0]]
  $region41: #{tpu_custom_call.1} parent=0
    _
  %s5 = ssub.s32 1, %s3
  %s6 = scalar_select 0, %s5, %s3
  loop: start=0, step=1, limit=4
  $region2: #{tpu_custom_call.1} parent=0 // loop_pre_header
    _
  $region3: #{tpu_custom_call.1} parent=0 // loop_header
    %s8 = sphi 0, %s12
    %p9 = scmp.ge.s32.totalorder %s8, 4
    %s18 = sphi 0, %s20
    %s21 = sphi 0, %s18
    %s22 = sphi 0, %s21
    %s38 = sphi 0, %s22
    %s42 = sphi 0, %s42
    %s44 = sphi 0, %s42
    %s45 = sphi 0, %s44
    %s59 = sphi 0, %s45
    %s65 = sphi 0, %s67
    %s68 = sphi 0, %s65
    %s69 = sphi 0, %s68
    %s85 = sphi 0, %s69
  $region4: #{tpu_custom_call.1} parent=0 // loop_header_branch
    %11 = sbr.rel (%p9) target = $region8
  $region5: #{tpu_custom_call.1} parent=0 // loop_body
    %s13 = ssub.s32 %s8, 1
    %s14 = ssub.s32 %s8, 2
    %s15 = sadd.s32 %s8, 1
    %s16 = ssub.s32 %s8, %s15
    %p17 = scmp.eq.s32.totalorder %s16, 0
    %s19 = sadd.s32 %s18, 1
    %s20 = scalar_select %p17, %s18, %s19
    %p23 = pneg %p17
    %p24 = scmp.eq.s32.totalorder %s8, 1
    %p25 = por %p23, %p24
    %p26 = scmp.ne.s32.totalorder %s18, %s21
    %p27 = scmp.eq.s32.totalorder %s8, 0
    %p28 = por %p26, %p27
    %p29 = scmp.ne.s32.totalorder %s18, %s21
    %p30 = scmp.eq.s32.totalorder %s13, 1
    %p31 = por %p29, %p30
    %p32 = scmp.ne.s32.totalorder %s21, %s22
    %p33 = scmp.eq.s32.totalorder %s13, 0
    %p34 = por %p32, %p33
    %p35 = scmp.ne.s32.totalorder %s21, %s22
    %p36 = scmp.eq.s32.totalorder %s14, 1
    %p37 = por %p35, %p36
    %p39 = scmp.ne.s32.totalorder %s22, %s38
    %p40 = scmp.eq.s32.totalorder %s14, 0
    %p41 = por %p39, %p40
    %s43 = sadd.s32 %s42, 1
    %p46 = scmp.eq.s32.totalorder %s8, 1
    %p47 = scmp.ne.s32.totalorder %s42, %s44
    %p48 = scmp.eq.s32.totalorder %s8, 0
    %p49 = por %p47, %p48
    %p50 = scmp.ne.s32.totalorder %s42, %s44
    %p51 = scmp.eq.s32.totalorder %s13, 1
    %p52 = por %p50, %p51
    %p53 = scmp.ne.s32.totalorder %s44, %s45
    %p54 = scmp.eq.s32.totalorder %s13, 0
    %p55 = por %p53, %p54
    %p56 = scmp.ne.s32.totalorder %s44, %s45
    %p57 = scmp.eq.s32.totalorder %s14, 1
    %p58 = por %p56, %p57
    %p60 = scmp.ne.s32.totalorder %s45, %s59
    %p61 = scmp.eq.s32.totalorder %s14, 0
    %p62 = por %p60, %p61
    %s63 = ssub.s32 %s8, %s15
    %p64 = scmp.eq.s32.totalorder %s63, 0
    %s66 = sadd.s32 %s65, 1
    %s67 = scalar_select %p64, %s65, %s66
    %p70 = pneg %p64
    %p71 = scmp.eq.s32.totalorder %s8, 1
    %p72 = por %p70, %p71
    %p73 = scmp.ne.s32.totalorder %s65, %s68
    %p74 = scmp.eq.s32.totalorder %s8, 0
    %p75 = por %p73, %p74
    %p76 = scmp.ne.s32.totalorder %s65, %s68
    %p77 = scmp.eq.s32.totalorder %s13, 1
    %p78 = por %p76, %p77
    %p79 = scmp.ne.s32.totalorder %s68, %s69
    %p80 = scmp.eq.s32.totalorder %s13, 0
    %p81 = por %p79, %p80
    %p82 = scmp.ne.s32.totalorder %s68, %s69
    %p83 = scmp.eq.s32.totalorder %s14, 1
    %p84 = por %p82, %p83
    %p86 = scmp.ne.s32.totalorder %s69, %s85
    %p87 = scmp.eq.s32.totalorder %s14, 0
    %p88 = por %p86, %p87
    %p89 = scmp.le.s32.totalorder 1, %s8
    %p90 = scmp.lt.s32.totalorder %s8, 3
    %p91 = pnand %p89, %p90
    %p92 = pneg %p91
    // Predicated region
    $region9: #{tpu_custom_call.1} parent=5 // pred_check
      _
    $region10: #{tpu_custom_call.1} parent=5 // pred_check_branch
      %94 = sbr.rel (%p91) target = $region12
    $region11: #{tpu_custom_call.1} parent=5 // pred_region
      %s95 = ssub.s32 %s8, 1
      // Predicated region
      $region13: #{tpu_custom_call.1} parent=11 // pred_check
        %p96 = pneg %p55
      $region14: #{tpu_custom_call.1} parent=11 // pred_check_branch
        %98 = sbr.rel (%p96) target = $region16
      $region15: #{tpu_custom_call.1} parent=11 // pred_region
        _
      $region16: #{tpu_custom_call.1} parent=11 // pred_fallthru
        _
    $region12: #{tpu_custom_call.1} parent=5 // pred_fallthru
      _
    %p99 = scmp.lt.s32.totalorder %s8, 2
    // Predicated region
    $region17: #{tpu_custom_call.1} parent=5 // pred_check
      %p100 = pneg %p99
    $region18: #{tpu_custom_call.1} parent=5 // pred_check_branch
      %102 = sbr.rel (%p100) target = $region20
    $region19: #{tpu_custom_call.1} parent=5 // pred_region
      // Predicated region
      $region21: #{tpu_custom_call.1} parent=19 // pred_check
        %p103 = pneg %p28
      $region22: #{tpu_custom_call.1} parent=19 // pred_check_branch
        %105 = sbr.rel (%p103) target = $region24
      $region23: #{tpu_custom_call.1} parent=19 // pred_region
        %s106 = smul.u32 32, %s8
        %p107 = scmp.lt.s32.totalorder %s106, 63
        %s108 = scalar_select %p107, %s106, 63
        %s109 = smul.addr %s108, 8
        %s110 = scalar_lea.vmem %s0, %s109
        %s111 = smul.u32 32, %s8
      $region24: #{tpu_custom_call.1} parent=19 // pred_fallthru
        _
    $region20: #{tpu_custom_call.1} parent=5 // pred_fallthru
      _
    %p112 = scmp.le.s32.totalorder 1, %s8
    %p113 = scmp.lt.s32.totalorder %s8, 3
    %p114 = pnand %p112, %p113
    %p115 = pneg %p114
    // Predicated region
    $region25: #{tpu_custom_call.1} parent=5 // pred_check
      _
    $region26: #{tpu_custom_call.1} parent=5 // pred_check_branch
      %117 = sbr.rel (%p114) target = $region28
    $region27: #{tpu_custom_call.1} parent=5 // pred_region
      %s118 = ssub.s32 %s8, 1
      %s119 = smul.u32 32, %s13
      %p120 = scmp.lt.s32.totalorder %s119, 63
      %s121 = scalar_select %p120, %s119, 63
      %s122 = smul.addr %s121, 8
      %s123 = scalar_lea.vmem %s0, %s122
      %p124 = pneg %p34
      %p125 = pneg %p31
      %p126 = pneg %p55
      %p127 = pneg %p52
      %p128 = pneg %p81
      %p129 = pneg %p78
      %s130 = smul.u32 32, %s13
      %p131 = scmp.lt.s32.totalorder %s130, 63
      %s132 = scalar_select %p131, %s130, 63
      %s133 = smul.addr %s132, 8
      %s134 = scalar_lea.vmem %s2, %s133
      %s135 = smul.u32 32, %s13
      %p136 = scmp.lt.s32.totalorder %s135, 63
      %s137 = scalar_select %p136, %s135, 63
      %s138 = smul.addr %s137, 8
      %s139 = scalar_lea.vmem %s0, %s138
      %s140 = smul.u32 32, %s13
      %s141 = smul.u32 32, %s13
      %p142 = scmp.lt.s32.totalorder %s141, 63
      %s143 = scalar_select %p142, %s141, 63
      %s144 = smul.addr %s143, 8
      %s145 = scalar_lea.vmem %s2, %s144
      %s146 = smul.u32 32, %s13
      %v147 = vld [vmem:[%s139] sm:$0xff]
      %v148 = vld [vmem:[%s139 + $0x8] sm:$0xff]
      %v149 = vld [vmem:[%s139 + $0x10] sm:$0xff]
      %v150 = vld [vmem:[%s139 + $0x18] sm:$0xff]
      %v151 = vld [vmem:[%s139 + $0x20] sm:$0xff]
      %v152 = vld [vmem:[%s139 + $0x28] sm:$0xff]
      %v153 = vld [vmem:[%s139 + $0x30] sm:$0xff]
      %v154 = vld [vmem:[%s139 + $0x38] sm:$0xff]
      %v155 = vld [vmem:[%s139 + $0x40] sm:$0xff]
      %v156 = vld [vmem:[%s139 + $0x48] sm:$0xff]
      %v157 = vld [vmem:[%s139 + $0x50] sm:$0xff]
      %v158 = vld [vmem:[%s139 + $0x58] sm:$0xff]
      %v159 = vld [vmem:[%s139 + $0x60] sm:$0xff]
      %v160 = vld [vmem:[%s139 + $0x68] sm:$0xff]
      %v161 = vld [vmem:[%s139 + $0x70] sm:$0xff]
      %v162 = vld [vmem:[%s139 + $0x78] sm:$0xff]
      %v163 = vld [vmem:[%s139 + $0x80] sm:$0xff]
      %v164 = vld [vmem:[%s139 + $0x88] sm:$0xff]
      %v165 = vld [vmem:[%s139 + $0x90] sm:$0xff]
      %v166 = vld [vmem:[%s139 + $0x98] sm:$0xff]
      %v167 = vld [vmem:[%s139 + $0xa0] sm:$0xff]
      %v168 = vld [vmem:[%s139 + $0xa8] sm:$0xff]
      %v169 = vld [vmem:[%s139 + $0xb0] sm:$0xff]
      %v170 = vld [vmem:[%s139 + $0xb8] sm:$0xff]
      %v171 = vld [vmem:[%s139 + $0xc0] sm:$0xff]
      %v172 = vld [vmem:[%s139 + $0xc8] sm:$0xff]
      %v173 = vld [vmem:[%s139 + $0xd0] sm:$0xff]
      %v174 = vld [vmem:[%s139 + $0xd8] sm:$0xff]
      %v175 = vld [vmem:[%s139 + $0xe0] sm:$0xff]
      %v176 = vld [vmem:[%s139 + $0xe8] sm:$0xff]
      %v177 = vld [vmem:[%s139 + $0xf0] sm:$0xff]
      %v178 = vld [vmem:[%s139 + $0xf8] sm:$0xff]
      %v179 = vld [vmem:[%s1] sm:$0x1]
      %vm180 = vcmask 392192
      %v181 = vsel %vm180, %v147, 0.0
      %182 = vadd.xlane.f32.xlu0 %v181
      %v183 = vpop.xlane.xlu0 %182
      %v184 = vsel %vm180, %v148, 0.0
      %185 = vadd.xlane.f32.xlu0 %v184
      %v186 = vpop.xlane.xlu0 %185
      %v187 = vsel %vm180, %v149, 0.0
      %188 = vadd.xlane.f32.xlu0 %v187
      %v189 = vpop.xlane.xlu0 %188
      %v190 = vsel %vm180, %v150, 0.0
      %191 = vadd.xlane.f32.xlu0 %v190
      %v192 = vpop.xlane.xlu0 %191
      %v193 = vsel %vm180, %v151, 0.0
      %194 = vadd.xlane.f32.xlu0 %v193
      %v195 = vpop.xlane.xlu0 %194
      %v196 = vsel %vm180, %v152, 0.0
      %197 = vadd.xlane.f32.xlu0 %v196
      %v198 = vpop.xlane.xlu0 %197
      %v199 = vsel %vm180, %v153, 0.0
      %200 = vadd.xlane.f32.xlu0 %v199
      %v201 = vpop.xlane.xlu0 %200
      %v202 = vsel %vm180, %v154, 0.0
      %203 = vadd.xlane.f32.xlu0 %v202
      %v204 = vpop.xlane.xlu0 %203
      %v205 = vsel %vm180, %v155, 0.0
      %206 = vadd.xlane.f32.xlu0 %v205
      %v207 = vpop.xlane.xlu0 %206
      %v208 = vsel %vm180, %v156, 0.0
      %209 = vadd.xlane.f32.xlu0 %v208
      %v210 = vpop.xlane.xlu0 %209
      %v211 = vsel %vm180, %v157, 0.0
      %212 = vadd.xlane.f32.xlu0 %v211
      %v213 = vpop.xlane.xlu0 %212
      %v214 = vsel %vm180, %v158, 0.0
      %215 = vadd.xlane.f32.xlu0 %v214
      %v216 = vpop.xlane.xlu0 %215
      %v217 = vsel %vm180, %v159, 0.0
      %218 = vadd.xlane.f32.xlu0 %v217
      %v219 = vpop.xlane.xlu0 %218
      %v220 = vsel %vm180, %v160, 0.0
      %221 = vadd.xlane.f32.xlu0 %v220
      %v222 = vpop.xlane.xlu0 %221
      %v223 = vsel %vm180, %v161, 0.0
      %224 = vadd.xlane.f32.xlu0 %v223
      %v225 = vpop.xlane.xlu0 %224
      %v226 = vsel %vm180, %v162, 0.0
      %227 = vadd.xlane.f32.xlu0 %v226
      %v228 = vpop.xlane.xlu0 %227
      %v229 = vsel %vm180, %v163, 0.0
      %230 = vadd.xlane.f32.xlu0 %v229
      %v231 = vpop.xlane.xlu0 %230
      %v232 = vsel %vm180, %v164, 0.0
      %233 = vadd.xlane.f32.xlu0 %v232
      %v234 = vpop.xlane.xlu0 %233
      %v235 = vsel %vm180, %v165, 0.0
      %236 = vadd.xlane.f32.xlu0 %v235
      %v237 = vpop.xlane.xlu0 %236
      %v238 = vsel %vm180, %v166, 0.0
      %239 = vadd.xlane.f32.xlu0 %v238
      %v240 = vpop.xlane.xlu0 %239
      %v241 = vsel %vm180, %v167, 0.0
      %242 = vadd.xlane.f32.xlu0 %v241
      %v243 = vpop.xlane.xlu0 %242
      %v244 = vsel %vm180, %v168, 0.0
      %245 = vadd.xlane.f32.xlu0 %v244
      %v246 = vpop.xlane.xlu0 %245
      %v247 = vsel %vm180, %v169, 0.0
      %248 = vadd.xlane.f32.xlu0 %v247
      %v249 = vpop.xlane.xlu0 %248
      %v250 = vsel %vm180, %v170, 0.0
      %251 = vadd.xlane.f32.xlu0 %v250
      %v252 = vpop.xlane.xlu0 %251
      %v253 = vsel %vm180, %v171, 0.0
      %254 = vadd.xlane.f32.xlu0 %v253
      %v255 = vpop.xlane.xlu0 %254
      %v256 = vsel %vm180, %v172, 0.0
      %257 = vadd.xlane.f32.xlu0 %v256
      %v258 = vpop.xlane.xlu0 %257
      %v259 = vsel %vm180, %v173, 0.0
      %260 = vadd.xlane.f32.xlu0 %v259
      %v261 = vpop.xlane.xlu0 %260
      %v262 = vsel %vm180, %v174, 0.0
      %263 = vadd.xlane.f32.xlu0 %v262
      %v264 = vpop.xlane.xlu0 %263
      %v265 = vsel %vm180, %v175, 0.0
      %266 = vadd.xlane.f32.xlu0 %v265
      %v267 = vpop.xlane.xlu0 %266
      %v268 = vsel %vm180, %v176, 0.0
      %269 = vadd.xlane.f32.xlu0 %v268
      %v270 = vpop.xlane.xlu0 %269
      %v271 = vsel %vm180, %v177, 0.0
      %272 = vadd.xlane.f32.xlu0 %v271
      %v273 = vpop.xlane.xlu0 %272
      %v274 = vsel %vm180, %v178, 0.0
      %275 = vadd.xlane.f32.xlu0 %v274
      %v276 = vpop.xlane.xlu0 %275
      %v277 = vrcp.pop 48.0
      %v278 = vmul.f32 %v183, %v277
      %v279 = vmul.f32 %v186, %v277
      %v280 = vmul.f32 %v189, %v277
      %v281 = vmul.f32 %v192, %v277
      %v282 = vmul.f32 %v195, %v277
      %v283 = vmul.f32 %v198, %v277
      %v284 = vmul.f32 %v201, %v277
      %v285 = vmul.f32 %v204, %v277
      %v286 = vmul.f32 %v207, %v277
      %v287 = vmul.f32 %v210, %v277
      %v288 = vmul.f32 %v213, %v277
      %v289 = vmul.f32 %v216, %v277
      %v290 = vmul.f32 %v219, %v277
      %v291 = vmul.f32 %v222, %v277
      %v292 = vmul.f32 %v225, %v277
      %v293 = vmul.f32 %v228, %v277
      %v294 = vmul.f32 %v231, %v277
      %v295 = vmul.f32 %v234, %v277
      %v296 = vmul.f32 %v237, %v277
      %v297 = vmul.f32 %v240, %v277
      %v298 = vmul.f32 %v243, %v277
      %v299 = vmul.f32 %v246, %v277
      %v300 = vmul.f32 %v249, %v277
      %v301 = vmul.f32 %v252, %v277
      %v302 = vmul.f32 %v255, %v277
      %v303 = vmul.f32 %v258, %v277
      %v304 = vmul.f32 %v261, %v277
      %v305 = vmul.f32 %v264, %v277
      %v306 = vmul.f32 %v267, %v277
      %v307 = vmul.f32 %v270, %v277
      %v308 = vmul.f32 %v273, %v277
      %v309 = vmul.f32 %v276, %v277
      %v310 = vmul.f32 %v147, %v147
      %v311 = vmul.f32 %v148, %v148
      %v312 = vmul.f32 %v149, %v149
      %v313 = vmul.f32 %v150, %v150
      %v314 = vmul.f32 %v151, %v151
      %v315 = vmul.f32 %v152, %v152
      %v316 = vmul.f32 %v153, %v153
      %v317 = vmul.f32 %v154, %v154
      %v318 = vmul.f32 %v155, %v155
      %v319 = vmul.f32 %v156, %v156
      %v320 = vmul.f32 %v157, %v157
      %v321 = vmul.f32 %v158, %v158
      %v322 = vmul.f32 %v159, %v159
      %v323 = vmul.f32 %v160, %v160
      %v324 = vmul.f32 %v161, %v161
      %v325 = vmul.f32 %v162, %v162
      %v326 = vmul.f32 %v163, %v163
      %v327 = vmul.f32 %v164, %v164
      %v328 = vmul.f32 %v165, %v165
      %v329 = vmul.f32 %v166, %v166
      %v330 = vmul.f32 %v167, %v167
      %v331 = vmul.f32 %v168, %v168
      %v332 = vmul.f32 %v169, %v169
      %v333 = vmul.f32 %v170, %v170
      %v334 = vmul.f32 %v171, %v171
      %v335 = vmul.f32 %v172, %v172
      %v336 = vmul.f32 %v173, %v173
      %v337 = vmul.f32 %v174, %v174
      %v338 = vmul.f32 %v175, %v175
      %v339 = vmul.f32 %v176, %v176
      %v340 = vmul.f32 %v177, %v177
      %v341 = vmul.f32 %v178, %v178
      %v342 = vsel %vm180, %v310, 0.0
      %343 = vadd.xlane.f32.xlu0 %v342
      %v344 = vpop.xlane.xlu0 %343
      %v345 = vsel %vm180, %v311, 0.0
      %346 = vadd.xlane.f32.xlu0 %v345
      %v347 = vpop.xlane.xlu0 %346
      %v348 = vsel %vm180, %v312, 0.0
      %349 = vadd.xlane.f32.xlu0 %v348
      %v350 = vpop.xlane.xlu0 %349
      %v351 = vsel %vm180, %v313, 0.0
      %352 = vadd.xlane.f32.xlu0 %v351
      %v353 = vpop.xlane.xlu0 %352
      %v354 = vsel %vm180, %v314, 0.0
      %355 = vadd.xlane.f32.xlu0 %v354
      %v356 = vpop.xlane.xlu0 %355
      %v357 = vsel %vm180, %v315, 0.0
      %358 = vadd.xlane.f32.xlu0 %v357
      %v359 = vpop.xlane.xlu0 %358
      %v360 = vsel %vm180, %v316, 0.0
      %361 = vadd.xlane.f32.xlu0 %v360
      %v362 = vpop.xlane.xlu0 %361
      %v363 = vsel %vm180, %v317, 0.0
      %364 = vadd.xlane.f32.xlu0 %v363
      %v365 = vpop.xlane.xlu0 %364
      %v366 = vsel %vm180, %v318, 0.0
      %367 = vadd.xlane.f32.xlu0 %v366
      %v368 = vpop.xlane.xlu0 %367
      %v369 = vsel %vm180, %v319, 0.0
      %370 = vadd.xlane.f32.xlu0 %v369
      %v371 = vpop.xlane.xlu0 %370
      %v372 = vsel %vm180, %v320, 0.0
      %373 = vadd.xlane.f32.xlu0 %v372
      %v374 = vpop.xlane.xlu0 %373
      %v375 = vsel %vm180, %v321, 0.0
      %376 = vadd.xlane.f32.xlu0 %v375
      %v377 = vpop.xlane.xlu0 %376
      %v378 = vsel %vm180, %v322, 0.0
      %379 = vadd.xlane.f32.xlu0 %v378
      %v380 = vpop.xlane.xlu0 %379
      %v381 = vsel %vm180, %v323, 0.0
      %382 = vadd.xlane.f32.xlu0 %v381
      %v383 = vpop.xlane.xlu0 %382
      %v384 = vsel %vm180, %v324, 0.0
      %385 = vadd.xlane.f32.xlu0 %v384
      %v386 = vpop.xlane.xlu0 %385
      %v387 = vsel %vm180, %v325, 0.0
      %388 = vadd.xlane.f32.xlu0 %v387
      %v389 = vpop.xlane.xlu0 %388
      %v390 = vsel %vm180, %v326, 0.0
      %391 = vadd.xlane.f32.xlu0 %v390
      %v392 = vpop.xlane.xlu0 %391
      %v393 = vsel %vm180, %v327, 0.0
      %394 = vadd.xlane.f32.xlu0 %v393
      %v395 = vpop.xlane.xlu0 %394
      %v396 = vsel %vm180, %v328, 0.0
      %397 = vadd.xlane.f32.xlu0 %v396
      %v398 = vpop.xlane.xlu0 %397
      %v399 = vsel %vm180, %v329, 0.0
      %400 = vadd.xlane.f32.xlu0 %v399
      %v401 = vpop.xlane.xlu0 %400
      %v402 = vsel %vm180, %v330, 0.0
      %403 = vadd.xlane.f32.xlu0 %v402
      %v404 = vpop.xlane.xlu0 %403
      %v405 = vsel %vm180, %v331, 0.0
      %406 = vadd.xlane.f32.xlu0 %v405
      %v407 = vpop.xlane.xlu0 %406
      %v408 = vsel %vm180, %v332, 0.0
      %409 = vadd.xlane.f32.xlu0 %v408
      %v410 = vpop.xlane.xlu0 %409
      %v411 = vsel %vm180, %v333, 0.0
      %412 = vadd.xlane.f32.xlu0 %v411
      %v413 = vpop.xlane.xlu0 %412
      %v414 = vsel %vm180, %v334, 0.0
      %415 = vadd.xlane.f32.xlu0 %v414
      %v416 = vpop.xlane.xlu0 %415
      %v417 = vsel %vm180, %v335, 0.0
      %418 = vadd.xlane.f32.xlu0 %v417
      %v419 = vpop.xlane.xlu0 %418
      %v420 = vsel %vm180, %v336, 0.0
      %421 = vadd.xlane.f32.xlu0 %v420
      %v422 = vpop.xlane.xlu0 %421
      %v423 = vsel %vm180, %v337, 0.0
      %424 = vadd.xlane.f32.xlu0 %v423
      %v425 = vpop.xlane.xlu0 %424
      %v426 = vsel %vm180, %v338, 0.0
      %427 = vadd.xlane.f32.xlu0 %v426
      %v428 = vpop.xlane.xlu0 %427
      %v429 = vsel %vm180, %v339, 0.0
      %430 = vadd.xlane.f32.xlu0 %v429
      %v431 = vpop.xlane.xlu0 %430
      %v432 = vsel %vm180, %v340, 0.0
      %433 = vadd.xlane.f32.xlu0 %v432
      %v434 = vpop.xlane.xlu0 %433
      %v435 = vsel %vm180, %v341, 0.0
      %436 = vadd.xlane.f32.xlu0 %v435
      %v437 = vpop.xlane.xlu0 %436
      %v438 = vmul.f32 %v344, %v277
      %v439 = vmul.f32 %v347, %v277
      %v440 = vmul.f32 %v350, %v277
      %v441 = vmul.f32 %v353, %v277
      %v442 = vmul.f32 %v356, %v277
      %v443 = vmul.f32 %v359, %v277
      %v444 = vmul.f32 %v362, %v277
      %v445 = vmul.f32 %v365, %v277
      %v446 = vmul.f32 %v368, %v277
      %v447 = vmul.f32 %v371, %v277
      %v448 = vmul.f32 %v374, %v277
      %v449 = vmul.f32 %v377, %v277
      %v450 = vmul.f32 %v380, %v277
      %v451 = vmul.f32 %v383, %v277
      %v452 = vmul.f32 %v386, %v277
      %v453 = vmul.f32 %v389, %v277
      %v454 = vmul.f32 %v392, %v277
      %v455 = vmul.f32 %v395, %v277
      %v456 = vmul.f32 %v398, %v277
      %v457 = vmul.f32 %v401, %v277
      %v458 = vmul.f32 %v404, %v277
      %v459 = vmul.f32 %v407, %v277
      %v460 = vmul.f32 %v410, %v277
      %v461 = vmul.f32 %v413, %v277
      %v462 = vmul.f32 %v416, %v277
      %v463 = vmul.f32 %v419, %v277
      %v464 = vmul.f32 %v422, %v277
      %v465 = vmul.f32 %v425, %v277
      %v466 = vmul.f32 %v428, %v277
      %v467 = vmul.f32 %v431, %v277
      %v468 = vmul.f32 %v434, %v277
      %v469 = vmul.f32 %v437, %v277
      %v470 = vmul.f32 %v278, %v278
      %v471 = vmul.f32 %v279, %v279
      %v472 = vmul.f32 %v280, %v280
      %v473 = vmul.f32 %v281, %v281
      %v474 = vmul.f32 %v282, %v282
      %v475 = vmul.f32 %v283, %v283
      %v476 = vmul.f32 %v284, %v284
      %v477 = vmul.f32 %v285, %v285
      %v478 = vmul.f32 %v286, %v286
      %v479 = vmul.f32 %v287, %v287
      %v480 = vmul.f32 %v288, %v288
      %v481 = vmul.f32 %v289, %v289
      %v482 = vmul.f32 %v290, %v290
      %v483 = vmul.f32 %v291, %v291
      %v484 = vmul.f32 %v292, %v292
      %v485 = vmul.f32 %v293, %v293
      %v486 = vmul.f32 %v294, %v294
      %v487 = vmul.f32 %v295, %v295
      %v488 = vmul.f32 %v296, %v296
      %v489 = vmul.f32 %v297, %v297
      %v490 = vmul.f32 %v298, %v298
      %v491 = vmul.f32 %v299, %v299
      %v492 = vmul.f32 %v300, %v300
      %v493 = vmul.f32 %v301, %v301
      %v494 = vmul.f32 %v302, %v302
      %v495 = vmul.f32 %v303, %v303
      %v496 = vmul.f32 %v304, %v304
      %v497 = vmul.f32 %v305, %v305
      %v498 = vmul.f32 %v306, %v306
      %v499 = vmul.f32 %v307, %v307
      %v500 = vmul.f32 %v308, %v308
      %v501 = vmul.f32 %v309, %v309
      %v502 = vsub.f32 %v438, %v470
      %v503 = vsub.f32 %v439, %v471
      %v504 = vsub.f32 %v440, %v472
      %v505 = vsub.f32 %v441, %v473
      %v506 = vsub.f32 %v442, %v474
      %v507 = vsub.f32 %v443, %v475
      %v508 = vsub.f32 %v444, %v476
      %v509 = vsub.f32 %v445, %v477
      %v510 = vsub.f32 %v446, %v478
      %v511 = vsub.f32 %v447, %v479
      %v512 = vsub.f32 %v448, %v480
      %v513 = vsub.f32 %v449, %v481
      %v514 = vsub.f32 %v450, %v482
      %v515 = vsub.f32 %v451, %v483
      %v516 = vsub.f32 %v452, %v484
      %v517 = vsub.f32 %v453, %v485
      %v518 = vsub.f32 %v454, %v486
      %v519 = vsub.f32 %v455, %v487
      %v520 = vsub.f32 %v456, %v488
      %v521 = vsub.f32 %v457, %v489
      %v522 = vsub.f32 %v458, %v490
      %v523 = vsub.f32 %v459, %v491
      %v524 = vsub.f32 %v460, %v492
      %v525 = vsub.f32 %v461, %v493
      %v526 = vsub.f32 %v462, %v494
      %v527 = vsub.f32 %v463, %v495
      %v528 = vsub.f32 %v464, %v496
      %v529 = vsub.f32 %v465, %v497
      %v530 = vsub.f32 %v466, %v498
      %v531 = vsub.f32 %v467, %v499
      %v532 = vsub.f32 %v468, %v500
      %v533 = vsub.f32 %v469, %v501
      %v534 = vmax.f32 %v502, 0.0
      %v535 = vmax.f32 %v503, 0.0
      %v536 = vmax.f32 %v504, 0.0
      %v537 = vmax.f32 %v505, 0.0
      %v538 = vmax.f32 %v506, 0.0
      %v539 = vmax.f32 %v507, 0.0
      %v540 = vmax.f32 %v508, 0.0
      %v541 = vmax.f32 %v509, 0.0
      %v542 = vmax.f32 %v510, 0.0
      %v543 = vmax.f32 %v511, 0.0
      %v544 = vmax.f32 %v512, 0.0
      %v545 = vmax.f32 %v513, 0.0
      %v546 = vmax.f32 %v514, 0.0
      %v547 = vmax.f32 %v515, 0.0
      %v548 = vmax.f32 %v516, 0.0
      %v549 = vmax.f32 %v517, 0.0
      %v550 = vmax.f32 %v518, 0.0
      %v551 = vmax.f32 %v519, 0.0
      %v552 = vmax.f32 %v520, 0.0
      %v553 = vmax.f32 %v521, 0.0
      %v554 = vmax.f32 %v522, 0.0
      %v555 = vmax.f32 %v523, 0.0
      %v556 = vmax.f32 %v524, 0.0
      %v557 = vmax.f32 %v525, 0.0
      %v558 = vmax.f32 %v526, 0.0
      %v559 = vmax.f32 %v527, 0.0
      %v560 = vmax.f32 %v528, 0.0
      %v561 = vmax.f32 %v529, 0.0
      %v562 = vmax.f32 %v530, 0.0
      %v563 = vmax.f32 %v531, 0.0
      %v564 = vmax.f32 %v532, 0.0
      %v565 = vmax.f32 %v533, 0.0
      %v566 = vadd.f32 %v534, 1e-05
      %v567 = vadd.f32 %v535, 1e-05
      %v568 = vadd.f32 %v536, 1e-05
      %v569 = vadd.f32 %v537, 1e-05
      %v570 = vadd.f32 %v538, 1e-05
      %v571 = vadd.f32 %v539, 1e-05
      %v572 = vadd.f32 %v540, 1e-05
      %v573 = vadd.f32 %v541, 1e-05
      %v574 = vadd.f32 %v542, 1e-05
      %v575 = vadd.f32 %v543, 1e-05
      %v576 = vadd.f32 %v544, 1e-05
      %v577 = vadd.f32 %v545, 1e-05
      %v578 = vadd.f32 %v546, 1e-05
      %v579 = vadd.f32 %v547, 1e-05
      %v580 = vadd.f32 %v548, 1e-05
      %v581 = vadd.f32 %v549, 1e-05
      %v582 = vadd.f32 %v550, 1e-05
      %v583 = vadd.f32 %v551, 1e-05
      %v584 = vadd.f32 %v552, 1e-05
      %v585 = vadd.f32 %v553, 1e-05
      %v586 = vadd.f32 %v554, 1e-05
      %v587 = vadd.f32 %v555, 1e-05
      %v588 = vadd.f32 %v556, 1e-05
      %v589 = vadd.f32 %v557, 1e-05
      %v590 = vadd.f32 %v558, 1e-05
      %v591 = vadd.f32 %v559, 1e-05
      %v592 = vadd.f32 %v560, 1e-05
      %v593 = vadd.f32 %v561, 1e-05
      %v594 = vadd.f32 %v562, 1e-05
      %v595 = vadd.f32 %v563, 1e-05
      %v596 = vadd.f32 %v564, 1e-05
      %v597 = vadd.f32 %v565, 1e-05
      %v598 = vrsqrt.pop %v566
      %v599 = vrsqrt.pop %v567
      %v600 = vrsqrt.pop %v568
      %v601 = vrsqrt.pop %v569
      %v602 = vrsqrt.pop %v570
      %v603 = vrsqrt.pop %v571
      %v604 = vrsqrt.pop %v572
      %v605 = vrsqrt.pop %v573
      %v606 = vrsqrt.pop %v574
      %v607 = vrsqrt.pop %v575
      %v608 = vrsqrt.pop %v576
      %v609 = vrsqrt.pop %v577
      %v610 = vrsqrt.pop %v578
      %v611 = vrsqrt.pop %v579
      %v612 = vrsqrt.pop %v580
      %v613 = vrsqrt.pop %v581
      %v614 = vrsqrt.pop %v582
      %v615 = vrsqrt.pop %v583
      %v616 = vrsqrt.pop %v584
      %v617 = vrsqrt.pop %v585
      %v618 = vrsqrt.pop %v586
      %v619 = vrsqrt.pop %v587
      %v620 = vrsqrt.pop %v588
      %v621 = vrsqrt.pop %v589
      %v622 = vrsqrt.pop %v590
      %v623 = vrsqrt.pop %v591
      %v624 = vrsqrt.pop %v592
      %v625 = vrsqrt.pop %v593
      %v626 = vrsqrt.pop %v594
      %v627 = vrsqrt.pop %v595
      %v628 = vrsqrt.pop %v596
      %v629 = vrsqrt.pop %v597
      %v630 = vmul.f32 %v147, %v598
      %v631 = vmul.f32 %v148, %v599
      %v632 = vmul.f32 %v149, %v600
      %v633 = vmul.f32 %v150, %v601
      %v634 = vmul.f32 %v151, %v602
      %v635 = vmul.f32 %v152, %v603
      %v636 = vmul.f32 %v153, %v604
      %v637 = vmul.f32 %v154, %v605
      %v638 = vmul.f32 %v155, %v606
      %v639 = vmul.f32 %v156, %v607
      %v640 = vmul.f32 %v157, %v608
      %v641 = vmul.f32 %v158, %v609
      %v642 = vmul.f32 %v159, %v610
      %v643 = vmul.f32 %v160, %v611
      %v644 = vmul.f32 %v161, %v612
      %v645 = vmul.f32 %v162, %v613
      %v646 = vmul.f32 %v163, %v614
      %v647 = vmul.f32 %v164, %v615
      %v648 = vmul.f32 %v165, %v616
      %v649 = vmul.f32 %v166, %v617
      %v650 = vmul.f32 %v167, %v618
      %v651 = vmul.f32 %v168, %v619
      %v652 = vmul.f32 %v169, %v620
      %v653 = vmul.f32 %v170, %v621
      %v654 = vmul.f32 %v171, %v622
      %v655 = vmul.f32 %v172, %v623
      %v656 = vmul.f32 %v173, %v624
      %v657 = vmul.f32 %v174, %v625
      %v658 = vmul.f32 %v175, %v626
      %v659 = vmul.f32 %v176, %v627
      %v660 = vmul.f32 %v177, %v628
      %v661 = vmul.f32 %v178, %v629
      %v663 = vlaneseq
      %v664 = vshrl.u32 %v663, 7
      %v665 = vsub.s32 0, %v664
      %v666 = vrot.slane %v179, %v665
      %v668 = vmul.f32 %v630, %v666
      %v669 = vmul.f32 %v631, %v666
      %v670 = vmul.f32 %v632, %v666
      %v671 = vmul.f32 %v633, %v666
      %v672 = vmul.f32 %v634, %v666
      %v673 = vmul.f32 %v635, %v666
      %v674 = vmul.f32 %v636, %v666
      %v675 = vmul.f32 %v637, %v666
      %v676 = vmul.f32 %v638, %v666
      %v677 = vmul.f32 %v639, %v666
      %v678 = vmul.f32 %v640, %v666
      %v679 = vmul.f32 %v641, %v666
      %v680 = vmul.f32 %v642, %v666
      %v681 = vmul.f32 %v643, %v666
      %v682 = vmul.f32 %v644, %v666
      %v683 = vmul.f32 %v645, %v666
      %v684 = vmul.f32 %v646, %v666
      %v685 = vmul.f32 %v647, %v666
      %v686 = vmul.f32 %v648, %v666
      %v687 = vmul.f32 %v649, %v666
      %v688 = vmul.f32 %v650, %v666
      %v689 = vmul.f32 %v651, %v666
      %v690 = vmul.f32 %v652, %v666
      %v691 = vmul.f32 %v653, %v666
      %v692 = vmul.f32 %v654, %v666
      %v693 = vmul.f32 %v655, %v666
      %v694 = vmul.f32 %v656, %v666
      %v695 = vmul.f32 %v657, %v666
      %v696 = vmul.f32 %v658, %v666
      %v697 = vmul.f32 %v659, %v666
      %v698 = vmul.f32 %v660, %v666
      %v699 = vmul.f32 %v661, %v666
      %700 = vst.msk [vmem:[%s145] sm:$0xff] %vm180, %v668
      %701 = vst.msk [vmem:[%s145 + $0x8] sm:$0xff] %vm180, %v669
      %702 = vst.msk [vmem:[%s145 + $0x10] sm:$0xff] %vm180, %v670
      %703 = vst.msk [vmem:[%s145 + $0x18] sm:$0xff] %vm180, %v671
      %704 = vst.msk [vmem:[%s145 + $0x20] sm:$0xff] %vm180, %v672
      %705 = vst.msk [vmem:[%s145 + $0x28] sm:$0xff] %vm180, %v673
      %706 = vst.msk [vmem:[%s145 + $0x30] sm:$0xff] %vm180, %v674
      %707 = vst.msk [vmem:[%s145 + $0x38] sm:$0xff] %vm180, %v675
      %708 = vst.msk [vmem:[%s145 + $0x40] sm:$0xff] %vm180, %v676
      %709 = vst.msk [vmem:[%s145 + $0x48] sm:$0xff] %vm180, %v677
      %710 = vst.msk [vmem:[%s145 + $0x50] sm:$0xff] %vm180, %v678
      %711 = vst.msk [vmem:[%s145 + $0x58] sm:$0xff] %vm180, %v679
      %712 = vst.msk [vmem:[%s145 + $0x60] sm:$0xff] %vm180, %v680
      %713 = vst.msk [vmem:[%s145 + $0x68] sm:$0xff] %vm180, %v681
      %714 = vst.msk [vmem:[%s145 + $0x70] sm:$0xff] %vm180, %v682
      %715 = vst.msk [vmem:[%s145 + $0x78] sm:$0xff] %vm180, %v683
      %716 = vst.msk [vmem:[%s145 + $0x80] sm:$0xff] %vm180, %v684
      %717 = vst.msk [vmem:[%s145 + $0x88] sm:$0xff] %vm180, %v685
      %718 = vst.msk [vmem:[%s145 + $0x90] sm:$0xff] %vm180, %v686
      %719 = vst.msk [vmem:[%s145 + $0x98] sm:$0xff] %vm180, %v687
      %720 = vst.msk [vmem:[%s145 + $0xa0] sm:$0xff] %vm180, %v688
      %721 = vst.msk [vmem:[%s145 + $0xa8] sm:$0xff] %vm180, %v689
      %722 = vst.msk [vmem:[%s145 + $0xb0] sm:$0xff] %vm180, %v690
      %723 = vst.msk [vmem:[%s145 + $0xb8] sm:$0xff] %vm180, %v691
      %724 = vst.msk [vmem:[%s145 + $0xc0] sm:$0xff] %vm180, %v692
      %725 = vst.msk [vmem:[%s145 + $0xc8] sm:$0xff] %vm180, %v693
      %726 = vst.msk [vmem:[%s145 + $0xd0] sm:$0xff] %vm180, %v694
      %727 = vst.msk [vmem:[%s145 + $0xd8] sm:$0xff] %vm180, %v695
      %728 = vst.msk [vmem:[%s145 + $0xe0] sm:$0xff] %vm180, %v696
      %729 = vst.msk [vmem:[%s145 + $0xe8] sm:$0xff] %vm180, %v697
      %730 = vst.msk [vmem:[%s145 + $0xf0] sm:$0xff] %vm180, %v698
      %731 = vst.msk [vmem:[%s145 + $0xf8] sm:$0xff] %vm180, %v699
      %s732 = smul.u32 32, %s13
      %p733 = scmp.lt.s32.totalorder %s732, 63
      %s734 = scalar_select %p733, %s732, 63
      %s735 = smul.addr %s734, 8
      %s736 = scalar_lea.vmem %s2, %s735
      // Predicated region
      $region29: #{tpu_custom_call.1} parent=27 // pred_check
        %p737 = pneg %p78
      $region30: #{tpu_custom_call.1} parent=27 // pred_check_branch
        %739 = sbr.rel (%p737) target = $region32
      $region31: #{tpu_custom_call.1} parent=27 // pred_region
        %s740 = smul.u32 32, %s13
      $region32: #{tpu_custom_call.1} parent=27 // pred_fallthru
        _
    $region28: #{tpu_custom_call.1} parent=5 // pred_fallthru
      _
    %p741 = scmp.le.s32.totalorder 2, %s8
    // Predicated region
    $region33: #{tpu_custom_call.1} parent=5 // pred_check
      %p742 = pneg %p741
    $region34: #{tpu_custom_call.1} parent=5 // pred_check_branch
      %744 = sbr.rel (%p742) target = $region36
    $region35: #{tpu_custom_call.1} parent=5 // pred_region
      %s745 = ssub.s32 %s8, 2
      // Predicated region
      $region37: #{tpu_custom_call.1} parent=35 // pred_check
        %p746 = pneg %p84
      $region38: #{tpu_custom_call.1} parent=35 // pred_check_branch
        %748 = sbr.rel (%p746) target = $region40
      $region39: #{tpu_custom_call.1} parent=35 // pred_region
        %s749 = smul.u32 32, %s14
        %p750 = scmp.lt.s32.totalorder %s749, 63
        %s751 = scalar_select %p750, %s749, 63
        %s752 = smul.addr %s751, 8
        %s753 = scalar_lea.vmem %s2, %s752
      $region40: #{tpu_custom_call.1} parent=35 // pred_fallthru
        _
    $region36: #{tpu_custom_call.1} parent=5 // pred_fallthru
      _
  $region6: #{tpu_custom_call.1} parent=0 // loop_footer
    %s12 = sadd.s32 1, %s8
  $region7: #{tpu_custom_call.1} parent=0 // loop_footer_branch
    %7 = sbr.rel target = $region3
  $region8: #{tpu_custom_call.1} parent=0 // loop_exit
    _

</llo_original>
